<compile_context>
chip_gen: v6e
topology: v6e:2x2x1
jax: 0.10.0
libtpu: 0.0.40
codegen_flags: <defaults>
</compile_context>

<pallas_src>
import functools

import jax
import jax.numpy as jnp
from jax.experimental import pallas as pl
from jax.experimental.pallas import tpu as pltpu

_MIB = 1024 * 1024


def _contrastive_loss_kernel(x1_ref, x2_ref, label_ref, out_ref, *,
                             margin: float, eps: float):
    # x1_ref / x2_ref: (TB, D) tiles in the inputs' native dtype.
    # label_ref / out_ref: (1, TB) float32 -- lane-dense epilogue and store.
    x1 = x1_ref[...].astype(jnp.float32)
    x2 = x2_ref[...].astype(jnp.float32)
    diff = x1 - x2 + eps                                    # matches F.pairwise_distance eps
    sq_col = jnp.sum(diff * diff, axis=-1, keepdims=True)   # (TB, 1) squared distance
    sq = jnp.transpose(sq_col)                              # (1, TB): one XLU transpose,
                                                            # keeps epilogue lane-dense
    d = jnp.sqrt(sq)                                        # euclidean distance
    hinge = jnp.maximum(margin - d, 0.0)                    # clamp(margin - d, min=0)
    lab = label_ref[...]                                    # (1, TB) in {0, 1}
    # NOTE: similar-pair term uses sq directly (PyTorch does pow(sqrt(sq), 2));
    # may differ by ~1 ulp per element -- harmless at f32 (test tolerances set
    # accordingly, do not tighten).
    out_ref[...] = (1.0 - lab) * sq + lab * (hinge * hinge)


def _sublane_pack(dtype) -> int:
    # Native sublane packing: f32 -> 8 rows/vreg, bf16 -> 16, int8/fp8 -> 32.
    return {1: 32, 2: 16}.get(jnp.dtype(dtype).itemsize, 8)


def _device_config(itemsize: int):
    """Returns (tile_bytes_per_input, vmem_limit_bytes, min_grid_steps)."""
    kind = ""
    try:
        kind = jax.devices()[0].device_kind.lower()
    except Exception:
        pass
    vmem_cap = None
    try:
        vmem_cap = int(pltpu.get_tpu_info().vmem_capacity_bytes)
    except Exception:
        pass
    is_v7 = ("v7" in kind or "tpu7" in kind
             or (vmem_cap is not None and vmem_cap <= 80 * _MIB))
    if is_v7:
        # v7x: 3.2 TB/s HBM -> per-step overhead dominates, use bigger tiles,
        # but only 64 MiB VMEM/TC: leave headroom for 2 inputs x 2 pipeline
        # buffers + in-kernel f32 upcast temporaries + compiler scratch.
        # Narrow dtypes upcast to f32 in-kernel, so keep their tiles at 4 MiB
        # in case the upcast chain is not fully fused per-vreg.
        # TODO(synk): confirm via bundle dump that upcast+diff+square+reduce is
        # fused; if so the narrow-dtype tile can also grow to 6-8 MiB.
        tile = (6 if itemsize >= 4 else 4) * _MIB
        return tile, 46 * _MIB, 2
    # v5e / v6e: single TC, 128 MiB physical VMEM.  4 MiB tiles already hit
    # ~85% of the HBM roofline; 64 MiB scoped limit leaves ample room for
    # 2 x 2 x 4 MiB buffers plus any materialized f32 temporaries.
    return 4 * _MIB, 64 * _MIB, 1


def _choose_block_rows(batch: int, dim: int, dtype, *,
                       tile_bytes: int, min_steps: int) -> int:
    """Batch-tile rows: dtype-native sublane multiple, ~tile_bytes per input."""
    pack = _sublane_pack(dtype)
    if batch <= pack:
        return batch                    # one block spanning the full (small) batch
    itemsize = jnp.dtype(dtype).itemsize
    rows = tile_bytes // max(1, dim * itemsize)
    tb = max(pack, min(batch, 8192, rows))
    if min_steps > 1 and batch >= min_steps * pack:
        # v7x megacore: ensure >= min_steps grid steps so both TCs get work.
        tb = min(tb, batch // min_steps)
    return max(pack, (tb // pack) * pack)


def contrastive_loss(output1, output2, label, *, margin: float = 2.0,
                     eps: float = 1e-6):
    """Pallas TPU implementation of ContrastiveLoss.forward."""
    assert output1.shape == output2.shape and output1.ndim == 2
    B, D = output1.shape
    itemsize = jnp.dtype(output1.dtype).itemsize

    tile_bytes, vmem_limit, min_steps = _device_config(itemsize)
    tb = _choose_block_rows(B, D, output1.dtype,
                            tile_bytes=tile_bytes, min_steps=min_steps)
    num_tiles = (B + tb - 1) // tb
    padded = num_tiles * tb

    # Labels laid out lane-dense, one (1, tb) row per grid step.  Padded tail
    # entries (which see stale VMEM inputs in-kernel) are sliced off before the
    # mean, so their results never count.
    label_rows = jnp.pad(jnp.asarray(label, jnp.float32).reshape(-1),
                         (0, padded - B)).reshape(num_tiles, tb)

    kernel = functools.partial(_contrastive_loss_kernel,
                               margin=float(margin), eps=float(eps))

    cost = pl.CostEstimate(
        flops=B * (4 * D + 8),            # sub, +eps, mul, reduce + tiny epilogue
        transcendentals=B,                # one sqrt per pair
        bytes_accessed=2 * B * D * itemsize + 2 * padded * 4,
    )

    per_pair = pl.pallas_call(
        kernel,
        out_shape=jax.ShapeDtypeStruct((num_tiles, tb), jnp.float32),
        grid=(num_tiles,),
        in_specs=[
            pl.BlockSpec((tb, D), lambda i: (i, 0)),   # x1 tile, native dtype
            pl.BlockSpec((tb, D), lambda i: (i, 0)),   # x2 tile, native dtype
            pl.BlockSpec((1, tb), lambda i: (i, 0)),   # label row, lane-dense
        ],
        out_specs=pl.BlockSpec((1, tb), lambda i: (i, 0)),
        compiler_params=pltpu.CompilerParams(
            dimension_semantics=("parallel",),          # disjoint output blocks
            vmem_limit_bytes=vmem_limit,
        ),
        cost_estimate=cost,
    )(output1, output2, label_rows)

    # Drop padded tail entries, then the tiny mean over B scalars is left to XLA.
    return jnp.mean(per_pair.reshape(-1)[:B])


def _reference_loss(output1, output2, label, margin=2.0, eps=1e-6):
    # Pure-JAX reference mirroring the PyTorch module (upcast like the kernel).
    o1 = output1.astype(jnp.float32)
    o2 = output2.astype(jnp.float32)
    diff = o1 - o2 + eps
    d = jnp.sqrt(jnp.sum(diff * diff, axis=-1))
    hinge = jnp.clip(margin - d, 0.0, None)
    return jnp.mean((1.0 - label) * d ** 2 + label * hinge ** 2)


if __name__ == "__main__":
    # --- test 1: small f32 case, batch fits one sublane pack -------------------
    k1, k2, k3 = jax.random.split(jax.random.PRNGKey(0), 3)
    B, D = 8, 32
    o1 = jax.random.normal(k1, (B, D), dtype=jnp.float32)
    o2 = jax.random.normal(k2, (B, D), dtype=jnp.float32)
    lab = jax.random.bernoulli(k3, 0.5, (B,)).astype(jnp.float32)

    loss = jax.block_until_ready(contrastive_loss(o1, o2, lab))
    ref = _reference_loss(o1, o2, lab)
    assert jnp.allclose(loss, ref, atol=1e-5, rtol=1e-5), (loss, ref)

    # --- test 2: bf16 inputs, batch not a multiple of the tile (tail block) ---
    k4, k5, k6 = jax.random.split(jax.random.PRNGKey(0), 3)
    B2, D2 = 20, 160
    o1b = jax.random.normal(k4, (B2, D2), dtype=jnp.float32).astype(jnp.bfloat16)
    o2b = jax.random.normal(k5, (B2, D2), dtype=jnp.float32).astype(jnp.bfloat16)
    labb = jax.random.bernoulli(k6, 0.5, (B2,)).astype(jnp.float32)

    loss2 = jax.block_until_ready(contrastive_loss(o1b, o2b, labb))
    ref2 = _reference_loss(o1b, o2b, labb)
    assert jnp.allclose(loss2, ref2, atol=1e-5, rtol=1e-4), (loss2, ref2)

    # --- test 3: f32 multi-tile with ragged tail, non-128 feature dim ---------
    k7, k8, k9 = jax.random.split(jax.random.PRNGKey(1), 3)
    B3, D3 = 50, 40
    o1c = jax.random.normal(k7, (B3, D3), dtype=jnp.float32)
    o2c = jax.random.normal(k8, (B3, D3), dtype=jnp.float32)
    labc = jax.random.bernoulli(k9, 0.5, (B3,)).astype(jnp.float32)

    loss3 = jax.block_until_ready(contrastive_loss(o1c, o2c, labc))
    ref3 = _reference_loss(o1c, o2c, labc)
    assert jnp.allclose(loss3, ref3, atol=1e-5, rtol=1e-5), (loss3, ref3)

    print("KERNEL_OK")
</pallas_src>

<mosaic_0001>
module attributes {stable_mosaic.version = 11 : i64} {
  func.func @_contrastive_loss_kernel(%arg0: i32, %arg1: memref<8x32xf32, #tpu.memory_space<vmem>>, %arg2: memref<8x32xf32, #tpu.memory_space<vmem>>, %arg3: memref<1x8xf32, #tpu.memory_space<vmem>>, %arg4: memref<1x8xf32, #tpu.memory_space<vmem>>) attributes {dimension_semantics = [#tpu.dimension_semantics<parallel>], iteration_bounds = array<i64: 1>, scalar_prefetch = 0 : i64, scratch_operands = 0 : i64, tpu.core_type = #tpu.core_type<tc>, window_params = [{transform_indices = @transform_0, window_bounds = array<i64: 8, 32>}, {transform_indices = @transform_1, window_bounds = array<i64: 8, 32>}, {transform_indices = @transform_2, window_bounds = array<i64: 1, 8>}, {transform_indices = @transform_3, window_bounds = array<i64: 1, 8>}]} {
    %c0 = arith.constant 0 : index
    %c0_0 = arith.constant 0 : index
    %0 = vector.load %arg1[%c0, %c0_0] : memref<8x32xf32, #tpu.memory_space<vmem>>, vector<8x32xf32>
    %c0_1 = arith.constant 0 : index
    %c0_2 = arith.constant 0 : index
    %1 = vector.load %arg2[%c0_1, %c0_2] : memref<8x32xf32, #tpu.memory_space<vmem>>, vector<8x32xf32>
    %2 = arith.subf %0, %1 : vector<8x32xf32>
    %cst = arith.constant 9.99999997E-7 : f32
    %3 = vector.broadcast %cst : f32 to vector<8x32xf32>
    %4 = arith.addf %2, %3 : vector<8x32xf32>
    %5 = arith.mulf %4, %4 : vector<8x32xf32>
    %cst_3 = arith.constant dense<0.000000e+00> : vector<8xf32>
    %6 = vector.multi_reduction <add>, %5, %cst_3 [1] : vector<8x32xf32> to vector<8xf32>
    %7 = vector.shape_cast %6 : vector<8xf32> to vector<8x1xf32>
    %8 = tpu.transpose %7, [1, 0] : vector<8x1xf32> -> vector<1x8xf32>
    %9 = math.sqrt %8 : vector<1x8xf32>
    %cst_4 = arith.constant 2.000000e+00 : f32
    %10 = vector.broadcast %cst_4 : f32 to vector<1x8xf32>
    %11 = arith.subf %10, %9 : vector<1x8xf32>
    %cst_5 = arith.constant 0.000000e+00 : f32
    %12 = vector.broadcast %cst_5 : f32 to vector<1x8xf32>
    %13 = arith.maximumf %11, %12 : vector<1x8xf32>
    %c0_6 = arith.constant 0 : index
    %c0_7 = arith.constant 0 : index
    %14 = vector.load %arg3[%c0_6, %c0_7] : memref<1x8xf32, #tpu.memory_space<vmem>>, vector<1x8xf32>
    %cst_8 = arith.constant 1.000000e+00 : f32
    %15 = vector.broadcast %cst_8 : f32 to vector<1x8xf32>
    %16 = arith.subf %15, %14 : vector<1x8xf32>
    %17 = arith.mulf %16, %8 : vector<1x8xf32>
    %18 = arith.mulf %13, %13 : vector<1x8xf32>
    %19 = arith.mulf %14, %18 : vector<1x8xf32>
    %20 = arith.addf %17, %19 : vector<1x8xf32>
    %c0_9 = arith.constant 0 : index
    %c0_10 = arith.constant 0 : index
    %21 = vector.load %arg4[%c0_9, %c0_10] : memref<1x8xf32, #tpu.memory_space<vmem>>, vector<1x8xf32>
    tpu.vector_store %arg4[%c0_9, %c0_10], %20 {strides = array<i32>} : memref<1x8xf32, #tpu.memory_space<vmem>>, vector<1x8xf32>,
    return
  }
  func.func @transform_0(%arg0: i32) -> (i32, i32) {
    %c0_i32 = arith.constant 0 : i32
    %c0_i32_0 = arith.constant 0 : i32
    return %arg0, %c0_i32 : i32, i32
  }
  func.func @transform_1(%arg0: i32) -> (i32, i32) {
    %c0_i32 = arith.constant 0 : i32
    %c0_i32_0 = arith.constant 0 : i32
    return %arg0, %c0_i32 : i32, i32
  }
  func.func @transform_2(%arg0: i32) -> (i32, i32) {
    %c0_i32 = arith.constant 0 : i32
    %c0_i32_0 = arith.constant 0 : i32
    return %arg0, %c0_i32 : i32, i32
  }
  func.func @transform_3(%arg0: i32) -> (i32, i32) {
    %c0_i32 = arith.constant 0 : i32
    %c0_i32_0 = arith.constant 0 : i32
    return %arg0, %c0_i32 : i32, i32
  }
}

</mosaic_0001>

<llo_original>
// kernel: tpu_custom_call.1
$region0: #{tpu_custom_call.1}
  #allocation0 [shape = 'u32[]', space=smem, size = 0x4, offset = 0x4, fixed_abs, tag = 'smem constant byte address 0x4 - core index']
  #allocation1 [shape = 'u32[144,128]{1,0:T(1,128)}', space=vmem, size = 0x12000, scoped, tag = 'internal scratch']
  %s0 = inlined_call_operand.hbm [shape: f32[8,32], index: 0, kind: input, shape index: {}]
  %s1 = inlined_call_operand.hbm [shape: f32[8,32], index: 1, kind: input, shape index: {}]
  %s2 = inlined_call_operand.vmem [shape: f32[1,8], index: 2, kind: input, shape index: {}]
  %s3 = inlined_call_operand.hbm [shape: f32[1,8], index: 3, kind: output, shape index: {}]
  %s4 = sld [smem:[#allocation0]]
  $region30: #{tpu_custom_call.1} parent=0
    _
  %s6 = ssub.s32 1, %s4
  %s7 = scalar_select 0, %s6, %s4
  $region1: #{tpu_custom_call.1} parent=0
    #allocation2 [shape = 'u8[4096]{0}', space=vmem, size = 0x1000, scoped, tag = 'input window, operand 0, single buffered']
    #allocation3 [shape = 's32[1]{0}', space=sflag, size = 0x4, scoped, tag = 'scoped memory for tpu_custom_call.1']
    #allocation4 [shape = 's32[1]{0}', space=sflag, size = 0x4, scoped, tag = 'scoped memory for tpu_custom_call.1']
    #allocation5 [shape = 'u8[4096]{0}', space=vmem, size = 0x1000, scoped, tag = 'input window, operand 1, single buffered']
    #allocation6 [shape = 's32[1]{0}', space=sflag, size = 0x4, scoped, tag = 'scoped memory for tpu_custom_call.1']
    #allocation7 [shape = 'u8[512]{0}', space=vmem, size = 0x400, scoped, tag = 'output window, operand 0, single buffered']
    %8 = vsyncpa [#allocation3], 0
    %9 = vsyncpa [#allocation6], 0
    %10 = vsyncpa [#allocation4], 0
    // Predicated region
    $region2: #{tpu_custom_call.1} parent=1 // pred_check
      _
    $region3: #{tpu_custom_call.1} parent=1 // pred_check_branch
      %12 = sbr.rel (0) target = $region5
    $region4: #{tpu_custom_call.1} parent=1 // pred_region
      %s14 = ssub.s32 128, 128
      %15 = vsyncadd [#allocation3], %s14
      %s17 = sshll.u32 [#allocation2], 4
      %s18 = int_to_ptr.vmem [resolvable:$true] %s17
      %20 = dma.hbm_to_vmem [thread:$0]  %s0, 128, %s18, [#allocation3]
    $region5: #{tpu_custom_call.1} parent=1 // pred_fallthru
      _
    // Predicated region
    $region6: #{tpu_custom_call.1} parent=1 // pred_check
      _
    $region7: #{tpu_custom_call.1} parent=1 // pred_check_branch
      %22 = sbr.rel (0) target = $region9
    $region8: #{tpu_custom_call.1} parent=1 // pred_region
      %s24 = ssub.s32 128, 128
      %25 = vsyncadd [#allocation6], %s24
      %s27 = sshll.u32 [#allocation5], 4
      %s28 = int_to_ptr.vmem [resolvable:$true] %s27
      %30 = dma.hbm_to_vmem [thread:$0]  %s1, 128, %s28, [#allocation6]
    $region9: #{tpu_custom_call.1} parent=1 // pred_fallthru
      _
    // Predicated region
    $region10: #{tpu_custom_call.1} parent=1 // pred_check
      _
    $region11: #{tpu_custom_call.1} parent=1 // pred_check_branch
      %32 = sbr.rel (0) target = $region13
    $region12: #{tpu_custom_call.1} parent=1 // pred_region
      _
    $region13: #{tpu_custom_call.1} parent=1 // pred_fallthru
      _
    // Predicated region
    $region14: #{tpu_custom_call.1} parent=1 // pred_check
      _
    $region15: #{tpu_custom_call.1} parent=1 // pred_check_branch
      %34 = sbr.rel (0) target = $region17
    $region16: #{tpu_custom_call.1} parent=1 // pred_region
      %35 = dma.done [#allocation3], 128
    $region17: #{tpu_custom_call.1} parent=1 // pred_fallthru
      _
    // Predicated region
    $region18: #{tpu_custom_call.1} parent=1 // pred_check
      _
    $region19: #{tpu_custom_call.1} parent=1 // pred_check_branch
      %37 = sbr.rel (0) target = $region21
    $region20: #{tpu_custom_call.1} parent=1 // pred_region
      %38 = dma.done [#allocation6], 128
    $region21: #{tpu_custom_call.1} parent=1 // pred_fallthru
      _
    %v39 = vld [vmem:[#allocation2] sm:$0xff]
    %v40 = vld [vmem:[#allocation5] sm:$0xff]
    %v41 = vsub.f32 %v39, %v40
    %v42 = vadd.f32 %v41, 1e-06
    %v43 = vmul.f32 %v42, %v42
    %vm44 = vcmask 261120
    %v45 = vsel %vm44, %v43, 0.0
    %46 = vadd.xlane.f32.xlu0 %v45
    %v47 = vpop.xlane.xlu0 %46
    %48 = vxpose.xlu0.b32.start [1/16] %v47, 128
    %49 = vxpose.xlu0.b32.cont [2/16] 0.0, 128
    %50 = vxpose.xlu0.b32.cont [3/16] 0.0, 128
    %51 = vxpose.xlu0.b32.cont [4/16] 0.0, 128
    %52 = vxpose.xlu0.b32.cont [5/16] 0.0, 128
    %53 = vxpose.xlu0.b32.cont [6/16] 0.0, 128
    %54 = vxpose.xlu0.b32.cont [7/16] 0.0, 128
    %55 = vxpose.xlu0.b32.cont [8/16] 0.0, 128
    %56 = vxpose.xlu0.b32.cont [9/16] 0.0, 128
    %57 = vxpose.xlu0.b32.cont [10/16] 0.0, 128
    %58 = vxpose.xlu0.b32.cont [11/16] 0.0, 128
    %59 = vxpose.xlu0.b32.cont [12/16] 0.0, 128
    %60 = vxpose.xlu0.b32.cont [13/16] 0.0, 128
    %61 = vxpose.xlu0.b32.cont [14/16] 0.0, 128
    %62 = vxpose.xlu0.b32.cont [15/16] 0.0, 128
    %63 = vxpose.xlu0.b32.end [16/16] 0.0, 128
    %v64 = vpop.trf.xlu0
    %v65 = vpop.trf.xlu0
    %v66 = vpop.trf.xlu0
    %v67 = vpop.trf.xlu0
    %v68 = vpop.trf.xlu0
    %v69 = vpop.trf.xlu0
    %v70 = vpop.trf.xlu0
    %v71 = vpop.trf.xlu0
    %v72 = vpop.trf.xlu0
    %v73 = vpop.trf.xlu0
    %v74 = vpop.trf.xlu0
    %v75 = vpop.trf.xlu0
    %v76 = vpop.trf.xlu0
    %v77 = vpop.trf.xlu0
    %v78 = vpop.trf.xlu0
    %v79 = vpop.trf.xlu0
    %v80 = vrsqrt.pop %v64
    %v81 = vmul.f32 %v64, %v80
    %vm82 = vcmp.eq.f32.partialorder %v64, inf
    %v83 = vsel %vm82, %v64, %v81
    %vm84 = vcmp.eq.f32.partialorder %v64, 0.0
    %v85 = vand.u32 %v64, 2147483648
    %v86 = vsel %vm84, %v85, %v83
    %v87 = vsub.f32 2.0, %v86
    %v88 = vmax.f32 %v87, 0.0
    %v89 = vld [vmem:[%s2] sm:$0x1]
    %v90 = vsub.f32 1.0, %v89
    %v91 = vmul.f32 %v90, %v64
    %v92 = vmul.f32 %v88, %v88
    %v93 = vmul.f32 %v89, %v92
    %v94 = vadd.f32 %v91, %v93
    %vm95 = vcmask 57344
    %96 = vst.msk [vmem:[#allocation7] sm:$0x1] %vm95, %v94
    // Predicated region
    $region22: #{tpu_custom_call.1} parent=1 // pred_check
      _
    $region23: #{tpu_custom_call.1} parent=1 // pred_check_branch
      %98 = sbr.rel (0) target = $region25
    $region24: #{tpu_custom_call.1} parent=1 // pred_region
      %s100 = ssub.s32 16, 16
      %101 = vsyncadd [#allocation4], %s100
      %s103 = sshll.u32 [#allocation7], 4
      %s104 = int_to_ptr.vmem [resolvable:$true] %s103
      %106 = dma.vmem_to_hbm [thread:$0]  %s104, 16, %s3, [#allocation4]
    $region25: #{tpu_custom_call.1} parent=1 // pred_fallthru
      _
    // Predicated region
    $region26: #{tpu_custom_call.1} parent=1 // pred_check
      _
    $region27: #{tpu_custom_call.1} parent=1 // pred_check_branch
      %108 = sbr.rel (0) target = $region29
    $region28: #{tpu_custom_call.1} parent=1 // pred_region
      %109 = dma.done [#allocation4], 16
    $region29: #{tpu_custom_call.1} parent=1 // pred_fallthru
      _
    %110 = vsyncpa [#allocation3], 1
    %111 = vsyncpa [#allocation6], 1
    %112 = vsyncpa [#allocation4], 1

</llo_original>
